<compile_context>
chip_gen: v7x
topology: tpu7x:2x2x1
jax: 0.10.0
libtpu: 0.0.40
codegen_flags: <defaults>
</compile_context>

<pallas_src>
import functools

import jax
import jax.numpy as jnp
from jax.experimental import pallas as pl
from jax.experimental.pallas import tpu as pltpu


def _round_up(x, m):
    return ((x + m - 1) // m) * m


def _n_tile_align():
    """Output-tile (N) alignment: 256 matches the 2x256 MXU on v6e/v7x,
    128 matches the 4x128x128 MXU on v5e (and older)."""
    try:
        kind = jax.devices()[0].device_kind.lower()
    except Exception:  # pragma: no cover - defensive
        return 256
    if any(tag in kind for tag in ("v2", "v3", "v4", "v5")):
        return 128
    return 256


def _pick_tiles(B, Din, Dout):
    """Lane/sublane aligned tiles, capped so the double-buffered working set
    stays far below the most restrictive scoped-VMEM budget (v5e)."""
    lane = 128
    n_align = _n_tile_align()
    tm = min(_round_up(B, 8), 256)
    tk = min(_round_up(Din, lane), 512)
    tn = min(_round_up(Dout, n_align if Dout > lane else lane), 512)
    return tm, tk, tn


def _vmem_limit_bytes(tm, tk, tn, x_b, w_b, b_b, o_b):
    # 2 pipeline buffers per input/output + f32 accumulator scratch, with 2x
    # headroom; clamped to a range safe on every generation (>= v5e default
    # scoped 16 MiB, <= v7x 64 MiB physical).
    buf = 2 * (tm * tk * x_b + tk * tn * w_b + tn * b_b + tm * tn * o_b)
    buf += tm * tn * 4
    return int(min(max(2 * buf + (2 << 20), 16 << 20), 48 << 20))


def _dual_linear_kernel(x_ref, w_ref, b_ref, o_ref, acc_ref, *, compute_dtype):
    """One (stream, m, n) output tile, reduced over the K grid axis."""
    k = pl.program_id(3)

    @pl.when(k == 0)
    def _():
        acc_ref[...] = jnp.zeros_like(acc_ref)

    # bf16 operands on the MXU, f32 accumulation.
    acc_ref[...] += jnp.dot(
        x_ref[...].astype(compute_dtype),
        w_ref[...].astype(compute_dtype),
        preferred_element_type=jnp.float32,
    )

    @pl.when(k == pl.num_programs(3) - 1)
    def _():
        o_ref[...] = (acc_ref[...] + b_ref[...].astype(jnp.float32)).astype(
            o_ref.dtype)


def semantic_space_forward(x, w, b, *, compute_dtype=jnp.bfloat16):
    """Fused dual linear: out[s] = x[s] @ w[s] + b[s] for s in {0, 1}.

    x: [S, B, Din]   w: [S, Din, Dout]   b: [S, 1, Dout]   ->   [S, B, Dout]
    """
    S, B, Din = x.shape
    Dout = w.shape[-1]

    tm, tk, tn = _pick_tiles(B, Din, Dout)
    Bp = _round_up(B, tm)
    Kp = _round_up(Din, tk)
    Np = _round_up(Dout, tn)

    # Zero-pad: zeros along the contraction (Din) keep the matmul exact;
    # padding along B / Dout is sliced away below.
    xp = jnp.pad(x, ((0, 0), (0, Bp - B), (0, Kp - Din)))
    wp = jnp.pad(w, ((0, 0), (0, Kp - Din), (0, Np - Dout)))
    bp = jnp.pad(b, ((0, 0), (0, 0), (0, Np - Dout)))

    grid = (S, Bp // tm, Np // tn, Kp // tk)

    kernel = functools.partial(_dual_linear_kernel, compute_dtype=compute_dtype)

    out = pl.pallas_call(
        kernel,
        out_shape=jax.ShapeDtypeStruct((S, Bp, Np), x.dtype),
        grid=grid,
        in_specs=[
            # x: [S, Bp, Kp] -> (tm, tk) tile; stream dim squeezed away.
            pl.BlockSpec((pl.Squeezed(), tm, tk), lambda s, i, j, k: (s, i, k)),
            # w: [S, Kp, Np] -> (tk, tn) tile.
            pl.BlockSpec((pl.Squeezed(), tk, tn), lambda s, i, j, k: (s, k, j)),
            # b: [S, 1, Np] -> (1, tn) tile (lane-aligned broadcast row).
            pl.BlockSpec((pl.Squeezed(), 1, tn), lambda s, i, j, k: (s, 0, j)),
        ],
        out_specs=pl.BlockSpec((pl.Squeezed(), tm, tn),
                               lambda s, i, j, k: (s, i, j)),
        scratch_shapes=[pltpu.VMEM((tm, tn), jnp.float32)],
        compiler_params=pltpu.CompilerParams(
            dimension_semantics=("parallel", "parallel", "parallel",
                                 "arbitrary"),
            vmem_limit_bytes=_vmem_limit_bytes(
                tm, tk, tn,
                xp.dtype.itemsize, wp.dtype.itemsize,
                bp.dtype.itemsize, x.dtype.itemsize),
        ),
        cost_estimate=pl.CostEstimate(
            flops=2 * S * Bp * Kp * Np,
            transcendentals=0,
            bytes_accessed=(xp.size * xp.dtype.itemsize
                            + wp.size * wp.dtype.itemsize
                            + bp.size * bp.dtype.itemsize
                            + S * Bp * Np * x.dtype.itemsize),
        ),
    )(xp, wp, bp)

    return out[:, :B, :Dout]


class SemanticSpacePallas:
    """JAX/Pallas port of SemanticSpace: two independent Linear layers,
    executed as one fused Pallas kernel."""

    def __init__(self, input_dim, output_dim, key, *, param_dtype=jnp.float32):
        k1, k2, k3, k4 = jax.random.split(key, 4)
        # nn.Linear-style uniform(-1/sqrt(in), 1/sqrt(in)) init.
        bound = 1.0 / (input_dim ** 0.5)
        # Weights stored as [Din, Dout] (transposed from PyTorch's [Dout, Din])
        # and stacked on a leading stream axis: 0 = text, 1 = video.
        text_w = jax.random.uniform(k1, (input_dim, output_dim), param_dtype,
                                    -bound, bound)
        text_b = jax.random.uniform(k2, (1, output_dim), param_dtype,
                                    -bound, bound)
        video_w = jax.random.uniform(k3, (input_dim, output_dim), param_dtype,
                                     -bound, bound)
        video_b = jax.random.uniform(k4, (1, output_dim), param_dtype,
                                     -bound, bound)
        self.w = jnp.stack([text_w, video_w])   # [2, Din, Dout]
        self.b = jnp.stack([text_b, video_b])   # [2, 1, Dout]
        self._forward = jax.jit(semantic_space_forward)

    def __call__(self, text_features, video_features):
        x = jnp.stack([text_features, video_features])  # [2, B, Din]
        out = self._forward(x, self.w, self.b)           # [2, B, Dout]
        return out[0], out[1]


if __name__ == "__main__":
    key = jax.random.PRNGKey(0)
    k_params, k_text, k_video = jax.random.split(key, 3)

    batch = 8
    input_dim = 32
    output_dim = 32

    model = SemanticSpacePallas(input_dim, output_dim, k_params)

    text_features = jax.random.normal(k_text, (batch, input_dim), jnp.float32)
    video_features = jax.random.normal(k_video, (batch, input_dim), jnp.float32)

    text_emb, video_emb = model(text_features, video_features)
    jax.block_until_ready((text_emb, video_emb))

    assert text_emb.shape == (batch, output_dim)
    assert video_emb.shape == (batch, output_dim)

    # Reference check against plain f32 JAX (same math as torch.nn.Linear).
    # Kernel uses bf16 MXU operands with f32 accumulation -> loose tolerance.
    text_ref = text_features @ model.w[0] + model.b[0]
    video_ref = video_features @ model.w[1] + model.b[1]
    assert jnp.allclose(text_emb, text_ref, atol=2e-2, rtol=2e-2)
    assert jnp.allclose(video_emb, video_ref, atol=2e-2, rtol=2e-2)

    print("KERNEL_OK")
</pallas_src>

<mosaic_0001>
module attributes {stable_mosaic.version = 11 : i64} {
  func.func @_dual_linear_kernel(%arg0: i32, %arg1: i32, %arg2: i32, %arg3: i32, %arg4: memref<1x8x128xf32, #tpu.memory_space<vmem>>, %arg5: memref<1x128x128xf32, #tpu.memory_space<vmem>>, %arg6: memref<1x1x128xf32, #tpu.memory_space<vmem>>, %arg7: memref<1x8x128xf32, #tpu.memory_space<vmem>>, %arg8: memref<8x128xf32, #tpu.memory_space<vmem>>) attributes {dimension_semantics = [#tpu.dimension_semantics<parallel>, #tpu.dimension_semantics<parallel>, #tpu.dimension_semantics<parallel>, #tpu.dimension_semantics<arbitrary>], iteration_bounds = array<i64: 2, 1, 1, 1>, scalar_prefetch = 0 : i64, scratch_operands = 1 : i64, tpu.core_type = #tpu.core_type<tc>, window_params = [{transform_indices = @transform_0, window_bounds = array<i64: 1, 8, 128>}, {transform_indices = @transform_1, window_bounds = array<i64: 1, 128, 128>}, {transform_indices = @transform_2, window_bounds = array<i64: 1, 1, 128>}, {transform_indices = @transform_3, window_bounds = array<i64: 1, 8, 128>}]} {
    %c0_i32 = arith.constant 0 : i32
    %0 = arith.cmpi eq, %arg3, %c0_i32 : i32
    %1 = arith.extui %0 : i1 to i32
    %c0_i32_0 = arith.constant 0 : i32
    %2 = arith.cmpi ne, %1, %c0_i32_0 : i32
    scf.if %2 {
      %cst_12 = arith.constant 0.000000e+00 : f32
      %16 = vector.broadcast %cst_12 : f32 to vector<8x128xf32>
      %c0_13 = arith.constant 0 : index
      %c0_14 = arith.constant 0 : index
      %17 = vector.load %arg8[%c0_13, %c0_14] : memref<8x128xf32, #tpu.memory_space<vmem>>, vector<8x128xf32>
      tpu.vector_store %arg8[%c0_13, %c0_14], %16 {strides = array<i32>} : memref<8x128xf32, #tpu.memory_space<vmem>>, vector<8x128xf32>,
    } else {
    }
    %c0 = arith.constant 0 : index
    %c0_1 = arith.constant 0 : index
    %3 = vector.load %arg8[%c0, %c0_1] : memref<8x128xf32, #tpu.memory_space<vmem>>, vector<8x128xf32>
    %c0_2 = arith.constant 0 : index
    %c0_3 = arith.constant 0 : index
    %c0_4 = arith.constant 0 : index
    %4 = vector.load %arg4[%c0_2, %c0_3, %c0_4] : memref<1x8x128xf32, #tpu.memory_space<vmem>>, vector<1x8x128xf32>
    %5 = vector.shape_cast %4 : vector<1x8x128xf32> to vector<8x128xf32>
    %6 = arith.truncf %5 : vector<8x128xf32> to vector<8x128xbf16>
    %c0_5 = arith.constant 0 : index
    %c0_6 = arith.constant 0 : index
    %c0_7 = arith.constant 0 : index
    %7 = vector.load %arg5[%c0_5, %c0_6, %c0_7] : memref<1x128x128xf32, #tpu.memory_space<vmem>>, vector<1x128x128xf32>
    %8 = vector.shape_cast %7 : vector<1x128x128xf32> to vector<128x128xf32>
    %9 = arith.truncf %8 : vector<128x128xf32> to vector<128x128xbf16>
    %cst = arith.constant dense<0.000000e+00> : vector<8x128xf32>
    %10 = tpu.matmul %6, %9, %cst {dimension_numbers = #tpu.dot_dimension_numbers<[1], [0], [0], [1], [0, 0, 1, 1], [], []>} : vector<8x128xbf16>, vector<128x128xbf16>, vector<8x128xf32> -> vector<8x128xf32>
    %11 = arith.addf %3, %10 : vector<8x128xf32>
    %c0_8 = arith.constant 0 : index
    %c0_9 = arith.constant 0 : index
    %12 = vector.load %arg8[%c0_8, %c0_9] : memref<8x128xf32, #tpu.memory_space<vmem>>, vector<8x128xf32>
    tpu.vector_store %arg8[%c0_8, %c0_9], %11 {strides = array<i32>} : memref<8x128xf32, #tpu.memory_space<vmem>>, vector<8x128xf32>,
    %c0_i32_10 = arith.constant 0 : i32
    %13 = arith.cmpi eq, %arg3, %c0_i32_10 : i32
    %14 = arith.extui %13 : i1 to i32
    %c0_i32_11 = arith.constant 0 : i32
    %15 = arith.cmpi ne, %14, %c0_i32_11 : i32
    scf.if %15 {
      %c0_12 = arith.constant 0 : index
      %c0_13 = arith.constant 0 : index
      %16 = vector.load %arg8[%c0_12, %c0_13] : memref<8x128xf32, #tpu.memory_space<vmem>>, vector<8x128xf32>
      %c0_14 = arith.constant 0 : index
      %c0_15 = arith.constant 0 : index
      %c0_16 = arith.constant 0 : index
      %17 = vector.load %arg6[%c0_14, %c0_15, %c0_16] : memref<1x1x128xf32, #tpu.memory_space<vmem>>, vector<1x1x128xf32>
      %18 = vector.shape_cast %17 : vector<1x1x128xf32> to vector<1x128xf32>
      %19 = vector.broadcast %18 : vector<1x128xf32> to vector<8x128xf32>
      %20 = arith.addf %16, %19 : vector<8x128xf32>
      %c0_17 = arith.constant 0 : index
      %c0_18 = arith.constant 0 : index
      %c0_19 = arith.constant 0 : index
      %21 = vector.load %arg7[%c0_17, %c0_18, %c0_19] : memref<1x8x128xf32, #tpu.memory_space<vmem>>, vector<1x8x128xf32>
      %22 = vector.shape_cast %21 : vector<1x8x128xf32> to vector<8x128xf32>
      %23 = vector.shape_cast %20 : vector<8x128xf32> to vector<1x8x128xf32>
      tpu.vector_store %arg7[%c0_17, %c0_18, %c0_19], %23 {strides = array<i32>} : memref<1x8x128xf32, #tpu.memory_space<vmem>>, vector<1x8x128xf32>,
    } else {
    }
    return
  }
  func.func @transform_0(%arg0: i32, %arg1: i32, %arg2: i32, %arg3: i32) -> (i32, i32, i32) {
    %c0_i32 = arith.constant 0 : i32
    return %arg0, %arg1, %arg3 : i32, i32, i32
  }
  func.func @transform_1(%arg0: i32, %arg1: i32, %arg2: i32, %arg3: i32) -> (i32, i32, i32) {
    %c0_i32 = arith.constant 0 : i32
    return %arg0, %arg3, %arg2 : i32, i32, i32
  }
  func.func @transform_2(%arg0: i32, %arg1: i32, %arg2: i32, %arg3: i32) -> (i32, i32, i32) {
    %c0_i32 = arith.constant 0 : i32
    %c0_i32_0 = arith.constant 0 : i32
    return %arg0, %c0_i32, %arg2 : i32, i32, i32
  }
  func.func @transform_3(%arg0: i32, %arg1: i32, %arg2: i32, %arg3: i32) -> (i32, i32, i32) {
    %c0_i32 = arith.constant 0 : i32
    return %arg0, %arg1, %arg2 : i32, i32, i32
  }
}

</mosaic_0001>

<llo_original>
// kernel: semantic_space_forward.1
$region0: #{semantic_space_forward.1}
  #allocation0 [shape = 'u32[]', space=smem, size = 0x4, offset = 0x4, fixed_abs, tag = 'smem constant byte address 0x4 - core index']
  #allocation1 [shape = 'u32[144,128]{1,0:T(1,128)}', space=vmem, size = 0x12000, scoped, tag = 'internal scratch']
  #allocation2 [shape = 'f32[8,128]{1,0:T(8,128)}', space=vmem, size = 0x1000, scoped, tag = 'scratch operand']
  %s0 = inlined_call_operand.vmem [shape: f32[2,8,128], index: 0, kind: input, shape index: {}]
  %s1 = inlined_call_operand.vmem [shape: f32[2,128,128], index: 1, kind: input, shape index: {}]
  %s2 = inlined_call_operand.vmem [shape: f32[2,1,128], index: 2, kind: input, shape index: {}]
  %s3 = inlined_call_operand.hbm [shape: f32[2,8,128], index: 3, kind: output, shape index: {}]
  %s4 = sld [smem:[#allocation0]]
  $region53: #{semantic_space_forward.1} parent=0
    _
  %s6 = ssub.s32 1, %s4
  %s7 = scalar_select 0, %s6, %s4
  $region1: #{semantic_space_forward.1} parent=0
    #allocation3 [shape = 'u8[8192]{0}', space=vmem, size = 0x2000, scoped, tag = 'output window, operand 0']
    #allocation4 [shape = 's32[2]{0}', space=sflag, size = 0x8, scoped, tag = 'scoped memory for semantic_space_forward.1']
    %8 = vsyncpa [#allocation4], 0
    %s9 = scalar_lea.sflag [#allocation4], 1
    %10 = vsyncpa %s9, 0
    loop: start=0, step=1, limit=4
    $region2: #{semantic_space_forward.1} parent=1 // loop_pre_header
      _
    $region3: #{semantic_space_forward.1} parent=1 // loop_header
      %s12 = sphi 0, %s16
      %p13 = scmp.ge.s32.totalorder %s12, 4
      %s19 = sphi 0, %s45
      %s20 = sphi 0, %s41
      %s21 = sphi 0, %s37
      %s22 = sphi 0, %s33
      %s23 = sphi 0, %s19
      %s24 = sphi 0, %s20
      %s25 = sphi 0, %s21
      %s26 = sphi 0, %s22
      %s27 = sphi 0, %s23
      %s28 = sphi 0, %s24
      %s29 = sphi 0, %s25
      %s30 = sphi 0, %s26
      %s52 = sphi 0, %s54
      %s55 = sphi 0, %s52
      %s56 = sphi 0, %s55
      %s72 = sphi 0, %s56
      %s82 = sphi 0, %s84
      %s85 = sphi 0, %s82
      %s86 = sphi 0, %s85
      %s102 = sphi 0, %s86
      %s110 = sphi 0, %s112
      %s113 = sphi 0, %s110
      %s114 = sphi 0, %s113
      %s130 = sphi 0, %s114
      %s140 = sphi 0, %s142
      %s143 = sphi 0, %s140
      %s144 = sphi 0, %s143
      %s160 = sphi 0, %s144
    $region4: #{semantic_space_forward.1} parent=1 // loop_header_branch
      %15 = sbr.rel (%p13) target = $region8
    $region5: #{semantic_space_forward.1} parent=1 // loop_body
      %s17 = ssub.s32 %s12, 1
      %s18 = ssub.s32 %s12, 2
      %s31 = sadd.s32 1, %s22
      %p32 = scmp.ge.s32.totalorder %s31, 1
      %s33 = scalar_select %p32, 0, %s31
      %s34 = sadd.s32 1, %s21
      %s35 = scalar_select %p32, %s34, %s21
      %p36 = scmp.ge.s32.totalorder %s35, 1
      %s37 = scalar_select %p36, 0, %s35
      %s38 = sadd.s32 1, %s20
      %s39 = scalar_select %p36, %s38, %s20
      %p40 = scmp.ge.s32.totalorder %s39, 1
      %s41 = scalar_select %p40, 0, %s39
      %s42 = sadd.s32 1, %s19
      %s43 = scalar_select %p40, %s42, %s19
      %p44 = scmp.ge.s32.totalorder %s43, 2
      %s45 = scalar_select %p44, 0, %s43
      %s46 = ssub.s32 %s19, %s45
      %s47 = ssub.s32 %s20, %s41
      %s48 = sor.u32 %s46, %s47
      %s49 = ssub.s32 %s22, %s33
      %s50 = sor.u32 %s48, %s49
      %p51 = scmp.eq.s32.totalorder %s50, 0
      %s53 = sadd.s32 %s52, 1
      %s54 = scalar_select %p51, %s52, %s53
      %p57 = pneg %p51
      %p58 = scmp.eq.s32.totalorder %s12, 1
      %p59 = por %p57, %p58
      %p60 = scmp.ne.s32.totalorder %s52, %s55
      %p61 = scmp.eq.s32.totalorder %s12, 0
      %p62 = por %p60, %p61
      %p63 = scmp.ne.s32.totalorder %s52, %s55
      %p64 = scmp.eq.s32.totalorder %s17, 1
      %p65 = por %p63, %p64
      %p66 = scmp.ne.s32.totalorder %s55, %s56
      %p67 = scmp.eq.s32.totalorder %s17, 0
      %p68 = por %p66, %p67
      %p69 = scmp.ne.s32.totalorder %s55, %s56
      %p70 = scmp.eq.s32.totalorder %s18, 1
      %p71 = por %p69, %p70
      %p73 = scmp.ne.s32.totalorder %s56, %s72
      %p74 = scmp.eq.s32.totalorder %s18, 0
      %p75 = por %p73, %p74
      %s76 = ssub.s32 %s19, %s45
      %s77 = ssub.s32 %s22, %s33
      %s78 = sor.u32 %s76, %s77
      %s79 = ssub.s32 %s21, %s37
      %s80 = sor.u32 %s78, %s79
      %p81 = scmp.eq.s32.totalorder %s80, 0
      %s83 = sadd.s32 %s82, 1
      %s84 = scalar_select %p81, %s82, %s83
      %p87 = pneg %p81
      %p88 = scmp.eq.s32.totalorder %s12, 1
      %p89 = por %p87, %p88
      %p90 = scmp.ne.s32.totalorder %s82, %s85
      %p91 = scmp.eq.s32.totalorder %s12, 0
      %p92 = por %p90, %p91
      %p93 = scmp.ne.s32.totalorder %s82, %s85
      %p94 = scmp.eq.s32.totalorder %s17, 1
      %p95 = por %p93, %p94
      %p96 = scmp.ne.s32.totalorder %s85, %s86
      %p97 = scmp.eq.s32.totalorder %s17, 0
      %p98 = por %p96, %p97
      %p99 = scmp.ne.s32.totalorder %s85, %s86
      %p100 = scmp.eq.s32.totalorder %s18, 1
      %p101 = por %p99, %p100
      %p103 = scmp.ne.s32.totalorder %s86, %s102
      %p104 = scmp.eq.s32.totalorder %s18, 0
      %p105 = por %p103, %p104
      %s106 = ssub.s32 %s19, %s45
      %s107 = ssub.s32 %s21, %s37
      %s108 = sor.u32 %s106, %s107
      %p109 = scmp.eq.s32.totalorder %s108, 0
      %s111 = sadd.s32 %s110, 1
      %s112 = scalar_select %p109, %s110, %s111
      %p115 = pneg %p109
      %p116 = scmp.eq.s32.totalorder %s12, 1
      %p117 = por %p115, %p116
      %p118 = scmp.ne.s32.totalorder %s110, %s113
      %p119 = scmp.eq.s32.totalorder %s12, 0
      %p120 = por %p118, %p119
      %p121 = scmp.ne.s32.totalorder %s110, %s113
      %p122 = scmp.eq.s32.totalorder %s17, 1
      %p123 = por %p121, %p122
      %p124 = scmp.ne.s32.totalorder %s113, %s114
      %p125 = scmp.eq.s32.totalorder %s17, 0
      %p126 = por %p124, %p125
      %p127 = scmp.ne.s32.totalorder %s113, %s114
      %p128 = scmp.eq.s32.totalorder %s18, 1
      %p129 = por %p127, %p128
      %p131 = scmp.ne.s32.totalorder %s114, %s130
      %p132 = scmp.eq.s32.totalorder %s18, 0
      %p133 = por %p131, %p132
      %s134 = ssub.s32 %s19, %s45
      %s135 = ssub.s32 %s20, %s41
      %s136 = sor.u32 %s134, %s135
      %s137 = ssub.s32 %s21, %s37
      %s138 = sor.u32 %s136, %s137
      %p139 = scmp.eq.s32.totalorder %s138, 0
      %s141 = sadd.s32 %s140, 1
      %s142 = scalar_select %p139, %s140, %s141
      %p145 = pneg %p139
      %p146 = scmp.eq.s32.totalorder %s12, 1
      %p147 = por %p145, %p146
      %p148 = scmp.ne.s32.totalorder %s140, %s143
      %p149 = scmp.eq.s32.totalorder %s12, 0
      %p150 = por %p148, %p149
      %p151 = scmp.ne.s32.totalorder %s140, %s143
      %p152 = scmp.eq.s32.totalorder %s17, 1
      %p153 = por %p151, %p152
      %p154 = scmp.ne.s32.totalorder %s143, %s144
      %p155 = scmp.eq.s32.totalorder %s17, 0
      %p156 = por %p154, %p155
      %p157 = scmp.ne.s32.totalorder %s143, %s144
      %p158 = scmp.eq.s32.totalorder %s18, 1
      %p159 = por %p157, %p158
      %p161 = scmp.ne.s32.totalorder %s144, %s160
      %p162 = scmp.eq.s32.totalorder %s18, 0
      %p163 = por %p161, %p162
      %p164 = scmp.le.s32.totalorder 1, %s12
      %p165 = scmp.lt.s32.totalorder %s12, 3
      %p166 = pnand %p164, %p165
      %p167 = pneg %p166
      // Predicated region
      $region9: #{semantic_space_forward.1} parent=5 // pred_check
        _
      $region10: #{semantic_space_forward.1} parent=5 // pred_check_branch
        %169 = sbr.rel (%p166) target = $region12
      $region11: #{semantic_space_forward.1} parent=5 // pred_region
        %s170 = ssub.s32 %s12, 1
      $region12: #{semantic_space_forward.1} parent=5 // pred_fallthru
        _
      %p171 = scmp.lt.s32.totalorder %s12, 2
      // Predicated region
      $region13: #{semantic_space_forward.1} parent=5 // pred_check
        %p172 = pneg %p171
      $region14: #{semantic_space_forward.1} parent=5 // pred_check_branch
        %174 = sbr.rel (%p172) target = $region16
      $region15: #{semantic_space_forward.1} parent=5 // pred_region
        // Predicated region
        $region17: #{semantic_space_forward.1} parent=15 // pred_check
          %p175 = pneg %p62
        $region18: #{semantic_space_forward.1} parent=15 // pred_check_branch
          %177 = sbr.rel (%p175) target = $region20
        $region19: #{semantic_space_forward.1} parent=15 // pred_region
          %p178 = scmp.lt.s32.totalorder %s19, 1
          %s179 = scalar_select %p178, %s19, 1
          %p180 = scmp.lt.s32.totalorder %s20, 0
          %s181 = scalar_select %p180, %s20, 0
          %p182 = scmp.lt.s32.totalorder %s22, 0
          %s183 = scalar_select %p182, %s22, 0
          %s184 = sadd.s32 %s183, %s181
          %s185 = sadd.s32 %s184, %s179
          %s186 = smul.addr %s185, 8
          %s187 = scalar_lea.vmem %s0, %s186
        $region20: #{semantic_space_forward.1} parent=15 // pred_fallthru
          _
        // Predicated region
        $region21: #{semantic_space_forward.1} parent=15 // pred_check
          %p188 = pneg %p92
        $region22: #{semantic_space_forward.1} parent=15 // pred_check_branch
          %190 = sbr.rel (%p188) target = $region24
        $region23: #{semantic_space_forward.1} parent=15 // pred_region
          %s191 = smul.u32 16, %s22
          %p192 = scmp.lt.s32.totalorder %s19, 1
          %s193 = scalar_select %p192, %s19, 1
          %p194 = scmp.lt.s32.totalorder %s191, 15
          %s195 = scalar_select %p194, %s191, 15
          %p196 = scmp.lt.s32.totalorder %s21, 0
          %s197 = scalar_select %p196, %s21, 0
          %s198 = sadd.s32 %s197, %s195
          %s199 = smul.addr %s193, 16
          %s200 = sadd.s32 %s198, %s199
          %s201 = smul.addr %s200, 8
          %s202 = scalar_lea.vmem %s1, %s201
          %s203 = smul.u32 16, %s22
        $region24: #{semantic_space_forward.1} parent=15 // pred_fallthru
          _
        // Predicated region
        $region25: #{semantic_space_forward.1} parent=15 // pred_check
          %p204 = pneg %p120
        $region26: #{semantic_space_forward.1} parent=15 // pred_check_branch
          %206 = sbr.rel (%p204) target = $region28
        $region27: #{semantic_space_forward.1} parent=15 // pred_region
          %p207 = scmp.lt.s32.totalorder %s19, 1
          %s208 = scalar_select %p207, %s19, 1
          %p209 = scmp.lt.s32.totalorder %s21, 0
          %s210 = scalar_select %p209, %s21, 0
          %s211 = sadd.s32 %s210, %s208
          %s212 = scalar_lea.vmem %s2, %s211
        $region28: #{semantic_space_forward.1} parent=15 // pred_fallthru
          _
      $region16: #{semantic_space_forward.1} parent=5 // pred_fallthru
        _
      %p213 = scmp.le.s32.totalorder 1, %s12
      %p214 = scmp.lt.s32.totalorder %s12, 3
      %p215 = pnand %p213, %p214
      %p216 = pneg %p215
      // Predicated region
      $region29: #{semantic_space_forward.1} parent=5 // pred_check
        _
      $region30: #{semantic_space_forward.1} parent=5 // pred_check_branch
        %218 = sbr.rel (%p215) target = $region32
      $region31: #{semantic_space_forward.1} parent=5 // pred_region
        %s219 = ssub.s32 %s12, 1
        %p220 = scmp.lt.s32.totalorder %s23, 1
        %s221 = scalar_select %p220, %s23, 1
        %p222 = scmp.lt.s32.totalorder %s24, 0
        %s223 = scalar_select %p222, %s24, 0
        %p224 = scmp.lt.s32.totalorder %s26, 0
        %s225 = scalar_select %p224, %s26, 0
        %s226 = sadd.s32 %s225, %s223
        %s227 = sadd.s32 %s226, %s221
        %s228 = smul.addr %s227, 8
        %s229 = scalar_lea.vmem %s0, %s228
        %p230 = pneg %p68
        %p231 = pneg %p65
        %s232 = smul.u32 16, %s26
        %p233 = scmp.lt.s32.totalorder %s23, 1
        %s234 = scalar_select %p233, %s23, 1
        %p235 = scmp.lt.s32.totalorder %s232, 15
        %s236 = scalar_select %p235, %s232, 15
        %p237 = scmp.lt.s32.totalorder %s25, 0
        %s238 = scalar_select %p237, %s25, 0
        %s239 = sadd.s32 %s238, %s236
        %s240 = smul.addr %s234, 16
        %s241 = sadd.s32 %s239, %s240
        %s242 = smul.addr %s241, 8
        %s243 = scalar_lea.vmem %s1, %s242
        %p244 = pneg %p98
        %p245 = pneg %p95
        %p246 = scmp.lt.s32.totalorder %s23, 1
        %s247 = scalar_select %p246, %s23, 1
        %p248 = scmp.lt.s32.totalorder %s25, 0
        %s249 = scalar_select %p248, %s25, 0
        %s250 = sadd.s32 %s249, %s247
        %s251 = scalar_lea.vmem %s2, %s250
        %p252 = pneg %p126
        %p253 = pneg %p123
        %p254 = pneg %p156
        %p255 = pneg %p153
        %s256 = sand.u32 %s143, 1
        %s257 = scalar_lea.sflag [#allocation4], %s256
        %s258 = sand.u32 %s143, 1
        %s259 = smul.addr %s258, 8
        %s260 = scalar_lea.vmem [#allocation3], %s259
        %p261 = scmp.lt.s32.totalorder %s23, 1
        %s262 = scalar_select %p261, %s23, 1
        %p263 = scmp.lt.s32.totalorder %s24, 0
        %s264 = scalar_select %p263, %s24, 0
        %p265 = scmp.lt.s32.totalorder %s26, 0
        %s266 = scalar_select %p265, %s26, 0
        %s267 = sadd.s32 %s266, %s264
        %s268 = sadd.s32 %s267, %s262
        %s269 = smul.addr %s268, 8
        %s270 = scalar_lea.vmem %s0, %s269
        %s271 = smul.u32 16, %s26
        %p272 = scmp.lt.s32.totalorder %s23, 1
        %s273 = scalar_select %p272, %s23, 1
        %p274 = scmp.lt.s32.totalorder %s271, 15
        %s275 = scalar_select %p274, %s271, 15
        %p276 = scmp.lt.s32.totalorder %s25, 0
        %s277 = scalar_select %p276, %s25, 0
        %s278 = sadd.s32 %s277, %s275
        %s279 = smul.addr %s273, 16
        %s280 = sadd.s32 %s278, %s279
        %s281 = smul.addr %s280, 8
        %s282 = scalar_lea.vmem %s1, %s281
        %s283 = smul.u32 16, %s26
        %p284 = scmp.lt.s32.totalorder %s23, 1
        %s285 = scalar_select %p284, %s23, 1
        %p286 = scmp.lt.s32.totalorder %s25, 0
        %s287 = scalar_select %p286, %s25, 0
        %s288 = sadd.s32 %s287, %s285
        %s289 = scalar_lea.vmem %s2, %s288
        %p291 = scmp.eq.s32.totalorder %s26, 0
        // Predicated region
        $region33: #{semantic_space_forward.1} parent=31 // pred_check
          %p292 = pneg %p291
        $region34: #{semantic_space_forward.1} parent=31 // pred_check_branch
          %294 = sbr.rel (%p292) target = $region36
        $region35: #{semantic_space_forward.1} parent=31 // pred_region
          %295 = vst [vmem:[#allocation2] sm:$0xff] 0.0
        $region36: #{semantic_space_forward.1} parent=31 // pred_fallthru
          _
        %v296 = vld [vmem:[#allocation2] sm:$0xff]
        %v297 = vld [vmem:[%s270] sm:$0xff]
        %v298 = vpack.c.bf16 %v297, %v297
        %v299 = vld [vmem:[%s282] sm:$0xff]
        %v300 = vld [vmem:[%s282 + $0x8] sm:$0xff]
        %v301 = vld [vmem:[%s282 + $0x10] sm:$0xff]
        %v302 = vld [vmem:[%s282 + $0x18] sm:$0xff]
        %v303 = vld [vmem:[%s282 + $0x20] sm:$0xff]
        %v304 = vld [vmem:[%s282 + $0x28] sm:$0xff]
        %v305 = vld [vmem:[%s282 + $0x30] sm:$0xff]
        %v306 = vld [vmem:[%s282 + $0x38] sm:$0xff]
        %v307 = vld [vmem:[%s282 + $0x40] sm:$0xff]
        %v308 = vld [vmem:[%s282 + $0x48] sm:$0xff]
        %v309 = vld [vmem:[%s282 + $0x50] sm:$0xff]
        %v310 = vld [vmem:[%s282 + $0x58] sm:$0xff]
        %v311 = vld [vmem:[%s282 + $0x60] sm:$0xff]
        %v312 = vld [vmem:[%s282 + $0x68] sm:$0xff]
        %v313 = vld [vmem:[%s282 + $0x70] sm:$0xff]
        %v314 = vld [vmem:[%s282 + $0x78] sm:$0xff]
        %v315 = vpack.c.bf16 %v300, %v299
        %v316 = vpack.c.bf16 %v302, %v301
        %v317 = vpack.c.bf16 %v304, %v303
        %v318 = vpack.c.bf16 %v306, %v305
        %v319 = vpack.c.bf16 %v308, %v307
        %v320 = vpack.c.bf16 %v310, %v309
        %v321 = vpack.c.bf16 %v312, %v311
        %v322 = vpack.c.bf16 %v314, %v313
        %323 = vmatprep.subr.bf16.mxu0 0
        %324 = vmatpush1.bf16.msra.mxu0 %v315
        %325 = vmatprep.subr.bf16.mxu0 0
        %326 = vmatpush1.bf16.msra.mxu0 %v316
        %327 = vmatprep.subr.bf16.mxu0 0
        %328 = vmatpush1.bf16.msra.mxu0 %v317
        %329 = vmatprep.subr.bf16.mxu0 0
        %330 = vmatpush1.bf16.msra.mxu0 %v318
        %331 = vmatprep.subr.bf16.mxu0 0
        %332 = vmatpush1.bf16.msra.mxu0 %v319
        %333 = vmatprep.subr.bf16.mxu0 0
        %334 = vmatpush1.bf16.msra.mxu0 %v320
        %335 = vmatprep.subr.bf16.mxu0 0
        %336 = vmatpush1.bf16.msra.mxu0 %v321
        %337 = vmatprep.subr.bf16.mxu0 0
        %338 = vmatpush1.bf16.msra.mxu0 %v322
        %339 = vmatprep.subr.bf16.mxu0 0
        %340 = vmatpush1.bf16.msra.mxu0 0
        %341 = vmatprep.subr.bf16.mxu0 0
        %342 = vmatpush1.bf16.msra.mxu0 0
        %343 = vmatprep.subr.bf16.mxu0 0
        %344 = vmatpush1.bf16.msra.mxu0 0
        %345 = vmatprep.subr.bf16.mxu0 0
        %346 = vmatpush1.bf16.msra.mxu0 0
        %347 = vmatprep.subr.bf16.mxu0 0
        %348 = vmatpush1.bf16.msra.mxu0 0
        %349 = vmatprep.subr.bf16.mxu0 0
        %350 = vmatpush1.bf16.msra.mxu0 0
        %351 = vmatprep.subr.bf16.mxu0 0
        %352 = vmatpush1.bf16.msra.mxu0 0
        %353 = vmatprep.subr.bf16.mxu0 0
        %354 = vmatpush1.bf16.msra.mxu0 0
        %355 = vmatprep.mubr.bf16.mxu0 0
        %356 = vmatmul.mubr.bf16.gmra.mrb[0].mxu0 %v298
        %v357 = vpop.f32.mrb[0].mxu0
        %v358 = vadd.f32 0.0, %v357
        %v359 = vpop.f32.mrb[0].mxu0
        %v360 = vpop.f32.mrb[0].mxu0
        %v361 = vpop.f32.mrb[0].mxu0
        %362 = vdwg.mxu0
        %v363 = vadd.f32 %v296, %v358
        %364 = vst [vmem:[#allocation2] sm:$0xff] %v363
        // Predicated region
        $region37: #{semantic_space_forward.1} parent=31 // pred_check
          %p365 = pneg %p291
        $region38: #{semantic_space_forward.1} parent=31 // pred_check_branch
          %367 = sbr.rel (%p365) target = $region40
        $region39: #{semantic_space_forward.1} parent=31 // pred_region
          %v368 = vld [vmem:[#allocation2] sm:$0xff]
          %v369 = vld [vmem:[%s289] sm:$0x1]
          %v371 = vlaneseq
          %v372 = vshrl.u32 %v371, 7
          %v373 = vsub.s32 0, %v372
          %v374 = vrot.slane %v369, %v373
          %v376 = vadd.f32 %v368, %v374
          %377 = vst [vmem:[%s260] sm:$0xff] %v376
        $region40: #{semantic_space_forward.1} parent=31 // pred_fallthru
          _
        %s378 = sand.u32 %s143, 1
        %s379 = scalar_lea.sflag [#allocation4], %s378
        %s380 = sand.u32 %s143, 1
        %s381 = smul.addr %s380, 8
        %s382 = scalar_lea.vmem [#allocation3], %s381
        // Predicated region
        $region41: #{semantic_space_forward.1} parent=31 // pred_check
          %p383 = pneg %p153
        $region42: #{semantic_space_forward.1} parent=31 // pred_check_branch
          %385 = sbr.rel (%p383) target = $region44
        $region43: #{semantic_space_forward.1} parent=31 // pred_region
          %s387 = ssub.s32 128, 128
          %388 = vsyncadd %s379, %s387
          %s389 = sadd.s32 %s25, %s24
          %s390 = sadd.s32 %s389, %s23
          %s391 = smul.addr %s390, 128
          %s392 = scalar_lea.hbm %s3, %s391
          %s394 = sshll.u32 %s382, 4
          %s395 = int_to_ptr.vmem [resolvable:$true] %s394
          %397 = dma.vmem_to_hbm [thread:$0]  %s395, 128, %s392, %s379
        $region44: #{semantic_space_forward.1} parent=31 // pred_fallthru
          _
      $region32: #{semantic_space_forward.1} parent=5 // pred_fallthru
        _
      %p398 = scmp.le.s32.totalorder 2, %s12
      // Predicated region
      $region45: #{semantic_space_forward.1} parent=5 // pred_check
        %p399 = pneg %p398
      $region46: #{semantic_space_forward.1} parent=5 // pred_check_branch
        %401 = sbr.rel (%p399) target = $region48
      $region47: #{semantic_space_forward.1} parent=5 // pred_region
        %s402 = ssub.s32 %s12, 2
        // Predicated region
        $region49: #{semantic_space_forward.1} parent=47 // pred_check
          %p403 = pneg %p159
        $region50: #{semantic_space_forward.1} parent=47 // pred_check_branch
          %405 = sbr.rel (%p403) target = $region52
        $region51: #{semantic_space_forward.1} parent=47 // pred_region
          %s406 = sand.u32 %s144, 1
          %s407 = scalar_lea.sflag [#allocation4], %s406
          %s408 = sand.u32 %s144, 1
          %s409 = smul.addr %s408, 8
          %s410 = scalar_lea.vmem [#allocation3], %s409
          %411 = dma.done %s407, 128
        $region52: #{semantic_space_forward.1} parent=47 // pred_fallthru
          _
      $region48: #{semantic_space_forward.1} parent=5 // pred_fallthru
        _
    $region6: #{semantic_space_forward.1} parent=1 // loop_footer
      %s16 = sadd.s32 1, %s12
    $region7: #{semantic_space_forward.1} parent=1 // loop_footer_branch
      %11 = sbr.rel target = $region3
    $region8: #{semantic_space_forward.1} parent=1 // loop_exit
      _
    %412 = vsyncpa [#allocation4], 1
    %s413 = scalar_lea.sflag [#allocation4], 1
    %414 = vsyncpa %s413, 1

</llo_original>
